<compile_context>
chip_gen: v7x
topology: tpu7x:2x2x1
jax: 0.10.0
libtpu: 0.0.40
codegen_flags: <defaults>
</compile_context>

<pallas_src>
import functools

import jax
import jax.numpy as jnp
import numpy as np
from jax.experimental import pallas as pl
from jax.experimental.pallas import tpu as pltpu


def _covv_kernel(at_ref, wt_ref, prm_ref, o_ref,
                 y_sc, sum_sc, scale_sc, shift_sc, *,
                 apply_relu, bn, nb, s_img, n_blocks, m_total, eps):
    """Fused conv + (act) + BatchNorm over grid (pass, image-block).

    pass 0: y = W @ A_blk + b (+ReLU) for nb images at once; parked in VMEM;
            lane-partial per-channel sums accumulated (VPU-only adds).
    pass 1: first step folds stats into per-channel scale/shift (one
            cross-lane reduce + centered-variance sweep over the parked y);
            every step writes a normalized, lane-dense (nb, OC, S) block.
    """
    p = pl.program_id(0)           # pass index
    n = pl.program_id(1)           # image-block index
    lanes = nb * s_img             # lane extent of one block

    @pl.when(p == 0)
    def _conv_pass():
        # (OC, Kdim) @ (Kdim, nb*S): bf16 inputs, f32 accumulation on the MXU.
        # NOTE: the contraction dim (C*KH*KW) is small for channel-poor layers;
        # TODO(synk): VPU shift-and-add direct conv when C*KH*KW << 128.
        y = jnp.dot(wt_ref[...], at_ref[...],
                    preferred_element_type=jnp.float32)       # (OC, nb*S) f32
        y = y + prm_ref[0]                                    # + bias (OC, 1)
        if apply_relu:
            y = jnp.maximum(y, 0.0)
        if bn:
            @pl.when(n == 0)
            def _():
                sum_sc[...] = jnp.zeros_like(sum_sc)
            # Park the un-normalized conv output in VMEM for pass 1.
            y_sc[n, :, :] = y
            # Lane-partial per-channel sum: pure VPU adds over 128-lane chunks,
            # no per-step XLU reduce.
            part = y[:, 0:128]
            for c in range(1, lanes // 128):
                part = part + y[:, c * 128:(c + 1) * 128]
            sum_sc[...] += part
        else:
            for img in range(nb):
                o_ref[img, :, :] = y[:, img * s_img:(img + 1) * s_img]

    if bn:
        @pl.when(p == 1)
        def _bn_pass():
            @pl.when(n == 0)
            def _finalize():
                cnt = jnp.float32(m_total)
                # Single cross-lane reduce of the lane-partial sums.
                mean = jnp.sum(sum_sc[...], axis=1, keepdims=True) / cnt
                # Centered (two-pass) variance over the parked y: avoids the
                # E[y^2]-E[y]^2 cancellation; VMEM-only traffic.
                sq = None
                for b in range(n_blocks):
                    for c in range(lanes // 128):
                        d = y_sc[b, :, c * 128:(c + 1) * 128] - mean
                        sq = d * d if sq is None else sq + d * d
                var = jnp.sum(sq, axis=1, keepdims=True) / cnt
                inv_std = jax.lax.rsqrt(var + eps)
                scale = prm_ref[1] * inv_std                   # gamma * inv_std
                scale_sc[...] = scale
                shift_sc[...] = prm_ref[2] - mean * scale      # beta - mean*scale

            z = y_sc[n, :, :] * scale_sc[...] + shift_sc[...]  # (OC, nb*S)
            for img in range(nb):
                o_ref[img, :, :] = z[:, img * s_img:(img + 1) * s_img]


# Conservative VMEM budget: below v5e's 16 MiB default scoped limit (v6e/v7x
# default to 32 MiB scoped; v7x physical VMEM is 64 MiB), so no vmem flag is
# needed on any generation.
_VMEM_BUDGET = 12 * 1024 * 1024


def _images_per_block(N, S, Kdim, OC):
    """Largest divisor of N whose A/out blocks (double-buffered) fit VMEM."""
    fixed = N * OC * S * 4                       # parked conv output (whole batch)
    fixed += OC * Kdim * 2 + 3 * OC * 4          # resident W (bf16) + params
    fixed += (OC * 128 + 2 * OC) * 4             # stats / scale / shift scratch
    assert fixed < _VMEM_BUDGET, (
        "TODO(synk): stage un-normalized y through the HBM output "
        "(input_output_aliases) when the batch's conv output does not fit "
        "VMEM (v7x has only 64 MiB physical)")
    for nb in range(N, 0, -1):
        if N % nb:
            continue
        per_block = nb * S * (Kdim * 2 + OC * 4)     # A block (bf16) + out (f32)
        if fixed + 2 * per_block <= _VMEM_BUDGET:    # double-buffered
            return nb
    return 1


def covv_layer_forward(x, weight, bias, gamma=None, beta=None, *, stride=1,
                       padding=0, act=None, bn=True, eps=1e-5):
    """x: (N, C, H, W) float32 (PyTorch NCHW). weight: (OC, C, KH, KW)."""
    N, C, H, W = x.shape
    OC, _, KH, KW = weight.shape

    xp = jnp.pad(x, ((0, 0), (0, 0), (padding, padding), (padding, padding)))
    Hp, Wp = H + 2 * padding, W + 2 * padding
    OH = (Hp - KH) // stride + 1
    OW = (Wp - KW) // stride + 1
    S = OH * OW            # per-image spatial extent -> lane axis
    M = N * S
    Kdim = C * KH * KW

    assert S % 128 == 0, (
        "demo assumes OH*OW is a multiple of 128 for lane-dense tiles "
        "(TODO(synk): ragged/padded tail tiles for arbitrary shapes)")

    # TODO(synk): for production shapes, stream conv patches inside the kernel
    # from a padded input (manual make_async_copy + pltpu.roll) instead of
    # materializing this KH*KW-fold im2col in HBM -- the 9x HBM expansion is
    # the largest remaining end-to-end cost for large layers.
    cols = []
    for i in range(KH):
        for j in range(KW):
            cols.append(xp[:, :, i:i + stride * OH:stride,
                           j:j + stride * OW:stride])
    patches = jnp.stack(cols, axis=2)                     # (N, C, KH*KW, OH, OW)
    At = patches.transpose(1, 2, 0, 3, 4).reshape(Kdim, M).astype(jnp.bfloat16)

    Wt = weight.reshape(OC, Kdim).astype(jnp.bfloat16)    # (OC, Kdim) bf16
    if gamma is None:
        gamma = jnp.ones((OC,), jnp.float32)
    if beta is None:
        beta = jnp.zeros((OC,), jnp.float32)
    prm = jnp.stack([bias.astype(jnp.float32),
                     gamma.astype(jnp.float32),
                     beta.astype(jnp.float32)], axis=0).reshape(3, OC, 1)

    apply_relu = isinstance(act, str) and act.lower() == "relu"
    nb = _images_per_block(N, S, Kdim, OC)   # images per block (demo: nb = N)
    NB = N // nb                             # image-blocks       (demo: NB = 1)
    L = nb * S                               # lanes per block    (demo: 512)
    n_passes = 2 if bn else 1
    grid = (n_passes, NB)

    if bn:
        # pass 0: output block parked on block 0 and never written -> never
        # flushed (Pallas flushes only on block-index change / grid end);
        # pass 1 writes block n.  A parks on its LAST block during pass 1 so
        # the pass boundary does not trigger a redundant A-tile DMA.
        a_idx = lambda p, n: (0, n * (1 - p) + (NB - 1) * p)
        out_idx = lambda p, n: (n * p, 0, 0)
    else:
        a_idx = lambda p, n: (0, n)
        out_idx = lambda p, n: (n, 0, 0)

    kernel = functools.partial(_covv_kernel, apply_relu=apply_relu, bn=bn,
                               nb=nb, s_img=S, n_blocks=NB, m_total=M, eps=eps)

    o = pl.pallas_call(
        kernel,
        out_shape=jax.ShapeDtypeStruct((N, OC, S), jnp.float32),
        grid=grid,
        in_specs=[
            pl.BlockSpec((Kdim, L), a_idx),                    # A^T block (bf16)
            pl.BlockSpec((OC, Kdim), lambda p, n: (0, 0)),     # W (resident)
            pl.BlockSpec((3, OC, 1), lambda p, n: (0, 0, 0)),  # bias/gamma/beta
        ],
        out_specs=pl.BlockSpec((nb, OC, S), out_idx),
        scratch_shapes=[
            pltpu.VMEM((NB, OC, L), jnp.float32),   # parked conv output
            pltpu.VMEM((OC, 128), jnp.float32),     # lane-partial channel sums
            pltpu.VMEM((OC, 1), jnp.float32),       # BN scale
            pltpu.VMEM((OC, 1), jnp.float32),       # BN shift
        ],
        compiler_params=pltpu.CompilerParams(
            # Stats accumulation + pass ordering are sequential dependencies.
            # TODO(synk): per-core partial stats + a "parallel" image axis to
            # use both v7x TensorCores.
            dimension_semantics=("arbitrary", "arbitrary")),
    )(At, Wt, prm)

    # (N, OC, OH*OW) -> (N, OC, OH, OW): contiguous metadata reshape only.
    return o.reshape(N, OC, OH, OW)


def _reference_forward(x, weight, bias, gamma, beta, *, stride, padding,
                       act=None, bn=True, eps=1e-5):
    OC = weight.shape[0]
    dn = jax.lax.conv_dimension_numbers(x.shape, weight.shape,
                                        ("NCHW", "OIHW", "NCHW"))
    y = jax.lax.conv_general_dilated(
        x, weight, (stride, stride), [(padding, padding)] * 2,
        dimension_numbers=dn) + bias.reshape(1, OC, 1, 1)
    if isinstance(act, str) and act.lower() == "relu":
        y = jnp.maximum(y, 0.0)
    if bn:
        mean = y.mean(axis=(0, 2, 3), keepdims=True)
        var = y.var(axis=(0, 2, 3), keepdims=True)
        y = ((y - mean) * jax.lax.rsqrt(var + eps)
             * gamma.reshape(1, OC, 1, 1) + beta.reshape(1, OC, 1, 1))
    return y


if __name__ == "__main__":
    # CovvLayer(in_channels=4, out_channels=8, kernel_size=3, stride=1,
    #           padding=1, act=None, bn=True)
    N, C, H, W = 2, 4, 16, 16
    OC, K = 8, 3
    stride, padding = 1, 1

    key = jax.random.PRNGKey(0)
    kx, kw, kb = jax.random.split(key, 3)

    x = jax.random.normal(kx, (N, C, H, W), dtype=jnp.float32)
    fan_in = C * K * K
    bound = 1.0 / np.sqrt(fan_in)
    weight = jax.random.uniform(kw, (OC, C, K, K), dtype=jnp.float32,
                                minval=-bound, maxval=bound)
    bias = jax.random.uniform(kb, (OC,), dtype=jnp.float32,
                              minval=-bound, maxval=bound)
    gamma = jnp.ones((OC,), dtype=jnp.float32)   # BatchNorm2d default init
    beta = jnp.zeros((OC,), dtype=jnp.float32)

    fwd = jax.jit(functools.partial(covv_layer_forward, stride=stride,
                                    padding=padding, act=None, bn=True))
    out = jax.block_until_ready(fwd(x, weight, bias, gamma, beta))

    ref = _reference_forward(x, weight, bias, gamma, beta,
                             stride=stride, padding=padding,
                             act=None, bn=True)
    assert out.shape == (N, OC, H, W), out.shape
    assert jnp.allclose(out, ref, atol=1e-2, rtol=1e-2), (
        float(jnp.max(jnp.abs(out - ref))))

    print("KERNEL_OK")
</pallas_src>

<mosaic_0001>
module attributes {stable_mosaic.version = 11 : i64} {
  func.func @_covv_kernel(%arg0: i32, %arg1: i32, %arg2: memref<36x512xbf16, #tpu.memory_space<vmem>>, %arg3: memref<8x36xbf16, #tpu.memory_space<vmem>>, %arg4: memref<3x8x1xf32, #tpu.memory_space<vmem>>, %arg5: memref<2x8x256xf32, #tpu.memory_space<vmem>>, %arg6: memref<1x8x512xf32, #tpu.memory_space<vmem>>, %arg7: memref<8x128xf32, #tpu.memory_space<vmem>>, %arg8: memref<8x1xf32, #tpu.memory_space<vmem>>, %arg9: memref<8x1xf32, #tpu.memory_space<vmem>>) attributes {dimension_semantics = [#tpu.dimension_semantics<arbitrary>, #tpu.dimension_semantics<arbitrary>], iteration_bounds = array<i64: 2, 1>, scalar_prefetch = 0 : i64, scratch_operands = 4 : i64, tpu.core_type = #tpu.core_type<tc>, window_params = [{transform_indices = @transform_0, window_bounds = array<i64: 36, 512>}, {pipeline_mode = #tpu.pipeline_mode<synchronous>, transform_indices = @transform_1, window_bounds = array<i64: 8, 36>}, {pipeline_mode = #tpu.pipeline_mode<synchronous>, transform_indices = @transform_2, window_bounds = array<i64: 3, 8, 1>}, {transform_indices = @transform_3, window_bounds = array<i64: 2, 8, 256>}]} {
    %c0_i32 = arith.constant 0 : i32
    %0 = arith.cmpi eq, %arg0, %c0_i32 : i32
    %1 = arith.extui %0 : i1 to i32
    %c0_i32_0 = arith.constant 0 : i32
    %2 = arith.cmpi ne, %1, %c0_i32_0 : i32
    scf.if %2 {
      %c0 = arith.constant 0 : index
      %c0_2 = arith.constant 0 : index
      %6 = vector.load %arg3[%c0, %c0_2] : memref<8x36xbf16, #tpu.memory_space<vmem>>, vector<8x36xbf16>
      %c0_3 = arith.constant 0 : index
      %c0_4 = arith.constant 0 : index
      %7 = vector.load %arg2[%c0_3, %c0_4] : memref<36x512xbf16, #tpu.memory_space<vmem>>, vector<36x512xbf16>
      %cst = arith.constant dense<0.000000e+00> : vector<8x512xf32>
      %8 = tpu.matmul %6, %7, %cst {dimension_numbers = #tpu.dot_dimension_numbers<[1], [0], [0], [1], [0, 0, 1, 1], [], []>} : vector<8x36xbf16>, vector<36x512xbf16>, vector<8x512xf32> -> vector<8x512xf32>
      %c0_5 = arith.constant 0 : index
      %c0_6 = arith.constant 0 : index
      %c0_7 = arith.constant 0 : index
      %9 = vector.load %arg4[%c0_5, %c0_6, %c0_7] : memref<3x8x1xf32, #tpu.memory_space<vmem>>, vector<1x8x1xf32>
      %10 = vector.shape_cast %9 : vector<1x8x1xf32> to vector<8x1xf32>
      %11 = vector.broadcast %10 : vector<8x1xf32> to vector<8x512xf32>
      %12 = arith.addf %8, %11 : vector<8x512xf32>
      %c0_i32_8 = arith.constant 0 : i32
      %13 = arith.cmpi eq, %arg1, %c0_i32_8 : i32
      %14 = arith.extui %13 : i1 to i32
      %c0_i32_9 = arith.constant 0 : i32
      %15 = arith.cmpi ne, %14, %c0_i32_9 : i32
      scf.if %15 {
        %cst_16 = arith.constant 0.000000e+00 : f32
        %30 = vector.broadcast %cst_16 : f32 to vector<8x128xf32>
        %c0_17 = arith.constant 0 : index
        %c0_18 = arith.constant 0 : index
        %31 = vector.load %arg7[%c0_17, %c0_18] : memref<8x128xf32, #tpu.memory_space<vmem>>, vector<8x128xf32>
        tpu.vector_store %arg7[%c0_17, %c0_18], %30 {strides = array<i32>} : memref<8x128xf32, #tpu.memory_space<vmem>>, vector<8x128xf32>,
      } else {
      }
      %16 = arith.index_cast %arg1 : i32 to index
      %c0_10 = arith.constant 0 : index
      %c0_11 = arith.constant 0 : index
      %17 = vector.load %arg6[%16, %c0_10, %c0_11] : memref<1x8x512xf32, #tpu.memory_space<vmem>>, vector<1x8x512xf32>
      %18 = vector.shape_cast %17 : vector<1x8x512xf32> to vector<8x512xf32>
      %19 = vector.shape_cast %12 : vector<8x512xf32> to vector<1x8x512xf32>
      tpu.vector_store %arg6[%16, %c0_10, %c0_11], %19 {strides = array<i32>} : memref<1x8x512xf32, #tpu.memory_space<vmem>>, vector<1x8x512xf32>,
      %20 = vector.extract_strided_slice %12 {offsets = [0, 0], sizes = [8, 128], strides = [1, 1]} : vector<8x512xf32> to vector<8x128xf32>
      %21 = vector.extract_strided_slice %12 {offsets = [0, 128], sizes = [8, 128], strides = [1, 1]} : vector<8x512xf32> to vector<8x128xf32>
      %22 = arith.addf %20, %21 : vector<8x128xf32>
      %23 = vector.extract_strided_slice %12 {offsets = [0, 256], sizes = [8, 128], strides = [1, 1]} : vector<8x512xf32> to vector<8x128xf32>
      %24 = arith.addf %22, %23 : vector<8x128xf32>
      %25 = vector.extract_strided_slice %12 {offsets = [0, 384], sizes = [8, 128], strides = [1, 1]} : vector<8x512xf32> to vector<8x128xf32>
      %26 = arith.addf %24, %25 : vector<8x128xf32>
      %c0_12 = arith.constant 0 : index
      %c0_13 = arith.constant 0 : index
      %27 = vector.load %arg7[%c0_12, %c0_13] : memref<8x128xf32, #tpu.memory_space<vmem>>, vector<8x128xf32>
      %28 = arith.addf %27, %26 : vector<8x128xf32>
      %c0_14 = arith.constant 0 : index
      %c0_15 = arith.constant 0 : index
      %29 = vector.load %arg7[%c0_14, %c0_15] : memref<8x128xf32, #tpu.memory_space<vmem>>, vector<8x128xf32>
      tpu.vector_store %arg7[%c0_14, %c0_15], %28 {strides = array<i32>} : memref<8x128xf32, #tpu.memory_space<vmem>>, vector<8x128xf32>,
    } else {
    }
    %c1_i32 = arith.constant 1 : i32
    %3 = arith.cmpi eq, %arg0, %c1_i32 : i32
    %4 = arith.extui %3 : i1 to i32
    %c0_i32_1 = arith.constant 0 : i32
    %5 = arith.cmpi ne, %4, %c0_i32_1 : i32
    scf.if %5 {
      %c0_i32_2 = arith.constant 0 : i32
      %6 = arith.cmpi eq, %arg1, %c0_i32_2 : i32
      %7 = arith.extui %6 : i1 to i32
      %c0_i32_3 = arith.constant 0 : i32
      %8 = arith.cmpi ne, %7, %c0_i32_3 : i32
      scf.if %8 {
        %c0_14 = arith.constant 0 : index
        %c0_15 = arith.constant 0 : index
        %26 = vector.load %arg7[%c0_14, %c0_15] : memref<8x128xf32, #tpu.memory_space<vmem>>, vector<8x128xf32>
        %cst = arith.constant dense<0.000000e+00> : vector<8xf32>
        %27 = vector.multi_reduction <add>, %26, %cst [1] : vector<8x128xf32> to vector<8xf32>
        %28 = vector.shape_cast %27 : vector<8xf32> to vector<8x1xf32>
        %cst_16 = arith.constant 5.120000e+02 : f32
        %29 = vector.broadcast %cst_16 : f32 to vector<8x1xf32>
        %30 = arith.divf %28, %29 : vector<8x1xf32>
        %c0_17 = arith.constant 0 : index
        %c0_18 = arith.constant 0 : index
        %c0_19 = arith.constant 0 : index
        %31 = vector.load %arg6[%c0_17, %c0_18, %c0_19] : memref<1x8x512xf32, #tpu.memory_space<vmem>>, vector<1x8x128xf32>
        %32 = vector.shape_cast %31 : vector<1x8x128xf32> to vector<8x128xf32>
        %33 = vector.broadcast %30 : vector<8x1xf32> to vector<8x128xf32>
        %34 = arith.subf %32, %33 : vector<8x128xf32>
        %35 = arith.mulf %34, %34 : vector<8x128xf32>
        %c0_20 = arith.constant 0 : index
        %c0_21 = arith.constant 0 : index
        %c128 = arith.constant 128 : index
        %36 = vector.load %arg6[%c0_20, %c0_21, %c128] : memref<1x8x512xf32, #tpu.memory_space<vmem>>, vector<1x8x128xf32>
        %37 = vector.shape_cast %36 : vector<1x8x128xf32> to vector<8x128xf32>
        %38 = vector.broadcast %30 : vector<8x1xf32> to vector<8x128xf32>
        %39 = arith.subf %37, %38 : vector<8x128xf32>
        %40 = arith.mulf %39, %39 : vector<8x128xf32>
        %41 = arith.addf %35, %40 : vector<8x128xf32>
        %c0_22 = arith.constant 0 : index
        %c0_23 = arith.constant 0 : index
        %c256 = arith.constant 256 : index
        %42 = vector.load %arg6[%c0_22, %c0_23, %c256] : memref<1x8x512xf32, #tpu.memory_space<vmem>>, vector<1x8x128xf32>
        %43 = vector.shape_cast %42 : vector<1x8x128xf32> to vector<8x128xf32>
        %44 = vector.broadcast %30 : vector<8x1xf32> to vector<8x128xf32>
        %45 = arith.subf %43, %44 : vector<8x128xf32>
        %46 = arith.mulf %45, %45 : vector<8x128xf32>
        %47 = arith.addf %41, %46 : vector<8x128xf32>
        %c0_24 = arith.constant 0 : index
        %c0_25 = arith.constant 0 : index
        %c384 = arith.constant 384 : index
        %48 = vector.load %arg6[%c0_24, %c0_25, %c384] : memref<1x8x512xf32, #tpu.memory_space<vmem>>, vector<1x8x128xf32>
        %49 = vector.shape_cast %48 : vector<1x8x128xf32> to vector<8x128xf32>
        %50 = vector.broadcast %30 : vector<8x1xf32> to vector<8x128xf32>
        %51 = arith.subf %49, %50 : vector<8x128xf32>
        %52 = arith.mulf %51, %51 : vector<8x128xf32>
        %53 = arith.addf %47, %52 : vector<8x128xf32>
        %cst_26 = arith.constant dense<0.000000e+00> : vector<8xf32>
        %54 = vector.multi_reduction <add>, %53, %cst_26 [1] : vector<8x128xf32> to vector<8xf32>
        %55 = vector.shape_cast %54 : vector<8xf32> to vector<8x1xf32>
        %cst_27 = arith.constant 5.120000e+02 : f32
        %56 = vector.broadcast %cst_27 : f32 to vector<8x1xf32>
        %57 = arith.divf %55, %56 : vector<8x1xf32>
        %cst_28 = arith.constant 9.99999974E-6 : f32
        %58 = vector.broadcast %cst_28 : f32 to vector<8x1xf32>
        %59 = arith.addf %57, %58 : vector<8x1xf32>
        %60 = math.rsqrt %59 : vector<8x1xf32>
        %c1_29 = arith.constant 1 : index
        %c0_30 = arith.constant 0 : index
        %c0_31 = arith.constant 0 : index
        %61 = vector.load %arg4[%c1_29, %c0_30, %c0_31] : memref<3x8x1xf32, #tpu.memory_space<vmem>>, vector<1x8x1xf32>
        %62 = vector.shape_cast %61 : vector<1x8x1xf32> to vector<8x1xf32>
        %63 = arith.mulf %62, %60 : vector<8x1xf32>
        %c0_32 = arith.constant 0 : index
        %c0_33 = arith.constant 0 : index
        %64 = vector.load %arg8[%c0_32, %c0_33] : memref<8x1xf32, #tpu.memory_space<vmem>>, vector<8x1xf32>
        tpu.vector_store %arg8[%c0_32, %c0_33], %63 {strides = array<i32>} : memref<8x1xf32, #tpu.memory_space<vmem>>, vector<8x1xf32>,
        %c2 = arith.constant 2 : index
        %c0_34 = arith.constant 0 : index
        %c0_35 = arith.constant 0 : index
        %65 = vector.load %arg4[%c2, %c0_34, %c0_35] : memref<3x8x1xf32, #tpu.memory_space<vmem>>, vector<1x8x1xf32>
        %66 = vector.shape_cast %65 : vector<1x8x1xf32> to vector<8x1xf32>
        %67 = arith.mulf %30, %63 : vector<8x1xf32>
        %68 = arith.subf %66, %67 : vector<8x1xf32>
        %c0_36 = arith.constant 0 : index
        %c0_37 = arith.constant 0 : index
        %69 = vector.load %arg9[%c0_36, %c0_37] : memref<8x1xf32, #tpu.memory_space<vmem>>, vector<8x1xf32>
        tpu.vector_store %arg9[%c0_36, %c0_37], %68 {strides = array<i32>} : memref<8x1xf32, #tpu.memory_space<vmem>>, vector<8x1xf32>,
      } else {
      }
      %9 = arith.index_cast %arg1 : i32 to index
      %c0 = arith.constant 0 : index
      %c0_4 = arith.constant 0 : index
      %10 = vector.load %arg6[%9, %c0, %c0_4] : memref<1x8x512xf32, #tpu.memory_space<vmem>>, vector<1x8x512xf32>
      %11 = vector.shape_cast %10 : vector<1x8x512xf32> to vector<8x512xf32>
      %c0_5 = arith.constant 0 : index
      %c0_6 = arith.constant 0 : index
      %12 = vector.load %arg8[%c0_5, %c0_6] : memref<8x1xf32, #tpu.memory_space<vmem>>, vector<8x1xf32>
      %13 = vector.broadcast %12 : vector<8x1xf32> to vector<8x512xf32>
      %14 = arith.mulf %11, %13 : vector<8x512xf32>
      %c0_7 = arith.constant 0 : index
      %c0_8 = arith.constant 0 : index
      %15 = vector.load %arg9[%c0_7, %c0_8] : memref<8x1xf32, #tpu.memory_space<vmem>>, vector<8x1xf32>
      %16 = vector.broadcast %15 : vector<8x1xf32> to vector<8x512xf32>
      %17 = arith.addf %14, %16 : vector<8x512xf32>
      %18 = vector.extract_strided_slice %17 {offsets = [0, 0], sizes = [8, 256], strides = [1, 1]} : vector<8x512xf32> to vector<8x256xf32>
      %c0_9 = arith.constant 0 : index
      %c0_10 = arith.constant 0 : index
      %c0_11 = arith.constant 0 : index
      %19 = vector.load %arg5[%c0_9, %c0_10, %c0_11] : memref<2x8x256xf32, #tpu.memory_space<vmem>>, vector<1x8x256xf32>
      %20 = vector.shape_cast %19 : vector<1x8x256xf32> to vector<8x256xf32>
      %21 = vector.shape_cast %18 : vector<8x256xf32> to vector<1x8x256xf32>
      tpu.vector_store %arg5[%c0_9, %c0_10, %c0_11], %21 {strides = array<i32>} : memref<2x8x256xf32, #tpu.memory_space<vmem>>, vector<1x8x256xf32>,
      %22 = vector.extract_strided_slice %17 {offsets = [0, 256], sizes = [8, 256], strides = [1, 1]} : vector<8x512xf32> to vector<8x256xf32>
      %c1 = arith.constant 1 : index
      %c0_12 = arith.constant 0 : index
      %c0_13 = arith.constant 0 : index
      %23 = vector.load %arg5[%c1, %c0_12, %c0_13] : memref<2x8x256xf32, #tpu.memory_space<vmem>>, vector<1x8x256xf32>
      %24 = vector.shape_cast %23 : vector<1x8x256xf32> to vector<8x256xf32>
      %25 = vector.shape_cast %22 : vector<8x256xf32> to vector<1x8x256xf32>
      tpu.vector_store %arg5[%c1, %c0_12, %c0_13], %25 {strides = array<i32>} : memref<2x8x256xf32, #tpu.memory_space<vmem>>, vector<1x8x256xf32>,
    } else {
    }
    return
  }
  func.func @transform_0(%arg0: i32, %arg1: i32) -> (i32, i32) {
    %c1_i32 = arith.constant 1 : i32
    %0 = arith.subi %c1_i32, %arg0 : i32
    %1 = arith.muli %arg1, %0 : i32
    %c0_i32 = arith.constant 0 : i32
    %2 = arith.muli %c0_i32, %arg0 : i32
    %3 = arith.addi %1, %2 : i32
    %c0_i32_0 = arith.constant 0 : i32
    %c0_i32_1 = arith.constant 0 : i32
    return %c0_i32_0, %3 : i32, i32
  }
  func.func @transform_1(%arg0: i32, %arg1: i32) -> (i32, i32) {
    %c0_i32 = arith.constant 0 : i32
    %c0_i32_0 = arith.constant 0 : i32
    %c0_i32_1 = arith.constant 0 : i32
    return %c0_i32, %c0_i32_0 : i32, i32
  }
  func.func @transform_2(%arg0: i32, %arg1: i32) -> (i32, i32, i32) {
    %c0_i32 = arith.constant 0 : i32
    %c0_i32_0 = arith.constant 0 : i32
    %c0_i32_1 = arith.constant 0 : i32
    %c0_i32_2 = arith.constant 0 : i32
    return %c0_i32, %c0_i32_0, %c0_i32_1 : i32, i32, i32
  }
  func.func @transform_3(%arg0: i32, %arg1: i32) -> (i32, i32, i32) {
    %0 = arith.muli %arg1, %arg0 : i32
    %c0_i32 = arith.constant 0 : i32
    %c0_i32_0 = arith.constant 0 : i32
    %c0_i32_1 = arith.constant 0 : i32
    return %0, %c0_i32, %c0_i32_0 : i32, i32, i32
  }
}

</mosaic_0001>

<llo_original>
// kernel: covv_layer_forward.1
$region0: #{covv_layer_forward.1}
  #allocation0 [shape = 'u32[]', space=smem, size = 0x4, offset = 0x4, fixed_abs, tag = 'smem constant byte address 0x4 - core index']
  #allocation1 [shape = 'u32[144,128]{1,0:T(1,128)}', space=vmem, size = 0x12000, scoped, tag = 'internal scratch']
  #allocation2 [shape = 'f32[1,8,512]{2,1,0:T(8,128)}', space=vmem, size = 0x4000, scoped, tag = 'scratch operand']
  #allocation3 [shape = 'f32[8,128]{1,0:T(8,128)}', space=vmem, size = 0x1000, scoped, tag = 'scratch operand']
  #allocation4 [shape = 'f32[8,1]{1,0:T(8,128)}', space=vmem, size = 0x1000, scoped, tag = 'scratch operand']
  #allocation5 [shape = 'f32[8,1]{1,0:T(8,128)}', space=vmem, size = 0x1000, scoped, tag = 'scratch operand']
  %s0 = inlined_call_operand.vmem [shape: bf16[36,512], index: 0, kind: input, shape index: {}]
  %s1 = inlined_call_operand.vmem [shape: bf16[8,36], index: 1, kind: input, shape index: {}]
  %s2 = inlined_call_operand.vmem [shape: f32[3,8,1], index: 2, kind: input, shape index: {}]
  %s3 = inlined_call_operand.vmem [shape: f32[2,8,256], index: 3, kind: output, shape index: {}]
  %s4 = sld [smem:[#allocation0]]
  $region61: #{covv_layer_forward.1} parent=0
    _
  %s6 = ssub.s32 1, %s4
  %s7 = scalar_select 0, %s6, %s4
  loop: start=0, step=1, limit=4
  $region2: #{covv_layer_forward.1} parent=0 // loop_pre_header
    _
  $region3: #{covv_layer_forward.1} parent=0 // loop_header
    %s9 = sphi 0, %s13
    %p10 = scmp.ge.s32.totalorder %s9, 4
    %s16 = sphi 0, %s28
    %s17 = sphi 0, %s24
    %s18 = sphi 0, %s16
    %s19 = sphi 0, %s17
    %s20 = sphi 0, %s18
    %s21 = sphi 0, %s19
    %s35 = sphi 0, %s37
    %s38 = sphi 0, %s35
    %s39 = sphi 0, %s38
    %s55 = sphi 0, %s39
    %s59 = sphi 0, %s59
    %s61 = sphi 0, %s59
    %s62 = sphi 0, %s61
    %s76 = sphi 0, %s62
    %s80 = sphi 0, %s80
    %s82 = sphi 0, %s80
    %s83 = sphi 0, %s82
    %s97 = sphi 0, %s83
    %s105 = sphi 0, %s107
    %s108 = sphi 0, %s105
    %s109 = sphi 0, %s108
    %s125 = sphi 0, %s109
  $region4: #{covv_layer_forward.1} parent=0 // loop_header_branch
    %12 = sbr.rel (%p10) target = $region8
  $region5: #{covv_layer_forward.1} parent=0 // loop_body
    %s14 = ssub.s32 %s9, 1
    %s15 = ssub.s32 %s9, 2
    %s22 = sadd.s32 1, %s17
    %p23 = scmp.ge.s32.totalorder %s22, 1
    %s24 = scalar_select %p23, 0, %s22
    %s25 = sadd.s32 1, %s16
    %s26 = scalar_select %p23, %s25, %s16
    %p27 = scmp.ge.s32.totalorder %s26, 2
    %s28 = scalar_select %p27, 0, %s26
    %s29 = ssub.s32 1, %s16
    %s30 = smul.u32 %s17, %s29
    %s31 = ssub.s32 1, %s28
    %s32 = smul.u32 %s24, %s31
    %s33 = ssub.s32 %s30, %s32
    %p34 = scmp.eq.s32.totalorder %s33, 0
    %s36 = sadd.s32 %s35, 1
    %s37 = scalar_select %p34, %s35, %s36
    %p40 = pneg %p34
    %p41 = scmp.eq.s32.totalorder %s9, 1
    %p42 = por %p40, %p41
    %p43 = scmp.ne.s32.totalorder %s35, %s38
    %p44 = scmp.eq.s32.totalorder %s9, 0
    %p45 = por %p43, %p44
    %p46 = scmp.ne.s32.totalorder %s35, %s38
    %p47 = scmp.eq.s32.totalorder %s14, 1
    %p48 = por %p46, %p47
    %p49 = scmp.ne.s32.totalorder %s38, %s39
    %p50 = scmp.eq.s32.totalorder %s14, 0
    %p51 = por %p49, %p50
    %p52 = scmp.ne.s32.totalorder %s38, %s39
    %p53 = scmp.eq.s32.totalorder %s15, 1
    %p54 = por %p52, %p53
    %p56 = scmp.ne.s32.totalorder %s39, %s55
    %p57 = scmp.eq.s32.totalorder %s15, 0
    %p58 = por %p56, %p57
    %s60 = sadd.s32 %s59, 1
    %p63 = scmp.eq.s32.totalorder %s9, 1
    %p64 = scmp.ne.s32.totalorder %s59, %s61
    %p65 = scmp.eq.s32.totalorder %s9, 0
    %p66 = por %p64, %p65
    %p67 = scmp.ne.s32.totalorder %s59, %s61
    %p68 = scmp.eq.s32.totalorder %s14, 1
    %p69 = por %p67, %p68
    %p70 = scmp.ne.s32.totalorder %s61, %s62
    %p71 = scmp.eq.s32.totalorder %s14, 0
    %p72 = por %p70, %p71
    %p73 = scmp.ne.s32.totalorder %s61, %s62
    %p74 = scmp.eq.s32.totalorder %s15, 1
    %p75 = por %p73, %p74
    %p77 = scmp.ne.s32.totalorder %s62, %s76
    %p78 = scmp.eq.s32.totalorder %s15, 0
    %p79 = por %p77, %p78
    %s81 = sadd.s32 %s80, 1
    %p84 = scmp.eq.s32.totalorder %s9, 1
    %p85 = scmp.ne.s32.totalorder %s80, %s82
    %p86 = scmp.eq.s32.totalorder %s9, 0
    %p87 = por %p85, %p86
    %p88 = scmp.ne.s32.totalorder %s80, %s82
    %p89 = scmp.eq.s32.totalorder %s14, 1
    %p90 = por %p88, %p89
    %p91 = scmp.ne.s32.totalorder %s82, %s83
    %p92 = scmp.eq.s32.totalorder %s14, 0
    %p93 = por %p91, %p92
    %p94 = scmp.ne.s32.totalorder %s82, %s83
    %p95 = scmp.eq.s32.totalorder %s15, 1
    %p96 = por %p94, %p95
    %p98 = scmp.ne.s32.totalorder %s83, %s97
    %p99 = scmp.eq.s32.totalorder %s15, 0
    %p100 = por %p98, %p99
    %s101 = smul.u32 %s17, %s16
    %s102 = smul.u32 %s24, %s28
    %s103 = ssub.s32 %s101, %s102
    %p104 = scmp.eq.s32.totalorder %s103, 0
    %s106 = sadd.s32 %s105, 1
    %s107 = scalar_select %p104, %s105, %s106
    %p110 = pneg %p104
    %p111 = scmp.eq.s32.totalorder %s9, 1
    %p112 = por %p110, %p111
    %p113 = scmp.ne.s32.totalorder %s105, %s108
    %p114 = scmp.eq.s32.totalorder %s9, 0
    %p115 = por %p113, %p114
    %p116 = scmp.ne.s32.totalorder %s105, %s108
    %p117 = scmp.eq.s32.totalorder %s14, 1
    %p118 = por %p116, %p117
    %p119 = scmp.ne.s32.totalorder %s108, %s109
    %p120 = scmp.eq.s32.totalorder %s14, 0
    %p121 = por %p119, %p120
    %p122 = scmp.ne.s32.totalorder %s108, %s109
    %p123 = scmp.eq.s32.totalorder %s15, 1
    %p124 = por %p122, %p123
    %p126 = scmp.ne.s32.totalorder %s109, %s125
    %p127 = scmp.eq.s32.totalorder %s15, 0
    %p128 = por %p126, %p127
    %p129 = scmp.le.s32.totalorder 1, %s9
    %p130 = scmp.lt.s32.totalorder %s9, 3
    %p131 = pnand %p129, %p130
    %p132 = pneg %p131
    // Predicated region
    $region9: #{covv_layer_forward.1} parent=5 // pred_check
      _
    $region10: #{covv_layer_forward.1} parent=5 // pred_check_branch
      %134 = sbr.rel (%p131) target = $region12
    $region11: #{covv_layer_forward.1} parent=5 // pred_region
      %s135 = ssub.s32 %s9, 1
      // Predicated region
      $region13: #{covv_layer_forward.1} parent=11 // pred_check
        %p136 = pneg %p72
      $region14: #{covv_layer_forward.1} parent=11 // pred_check_branch
        %138 = sbr.rel (%p136) target = $region16
      $region15: #{covv_layer_forward.1} parent=11 // pred_region
        _
      $region16: #{covv_layer_forward.1} parent=11 // pred_fallthru
        _
      // Predicated region
      $region17: #{covv_layer_forward.1} parent=11 // pred_check
        %p139 = pneg %p93
      $region18: #{covv_layer_forward.1} parent=11 // pred_check_branch
        %141 = sbr.rel (%p139) target = $region20
      $region19: #{covv_layer_forward.1} parent=11 // pred_region
        _
      $region20: #{covv_layer_forward.1} parent=11 // pred_fallthru
        _
    $region12: #{covv_layer_forward.1} parent=5 // pred_fallthru
      _
    %p142 = scmp.lt.s32.totalorder %s9, 2
    // Predicated region
    $region21: #{covv_layer_forward.1} parent=5 // pred_check
      %p143 = pneg %p142
    $region22: #{covv_layer_forward.1} parent=5 // pred_check_branch
      %145 = sbr.rel (%p143) target = $region24
    $region23: #{covv_layer_forward.1} parent=5 // pred_region
      // Predicated region
      $region25: #{covv_layer_forward.1} parent=23 // pred_check
        %p146 = pneg %p45
      $region26: #{covv_layer_forward.1} parent=23 // pred_check_branch
        %148 = sbr.rel (%p146) target = $region28
      $region27: #{covv_layer_forward.1} parent=23 // pred_region
        %s149 = ssub.s32 1, %s16
        %s150 = smul.u32 %s17, %s149
        %s151 = smul.u32 4, %s150
        %p152 = scmp.lt.s32.totalorder %s151, 3
        %s153 = scalar_select %p152, %s151, 3
        %s154 = smul.addr %s153, 4
        %s155 = scalar_lea.vmem %s0, %s154
        %s156 = ssub.s32 1, %s16
        %s157 = smul.u32 %s17, %s156
        %s158 = smul.u32 4, %s157
      $region28: #{covv_layer_forward.1} parent=23 // pred_fallthru
        _
    $region24: #{covv_layer_forward.1} parent=5 // pred_fallthru
      _
    %p159 = scmp.le.s32.totalorder 1, %s9
    %p160 = scmp.lt.s32.totalorder %s9, 3
    %p161 = pnand %p159, %p160
    %p162 = pneg %p161
    // Predicated region
    $region29: #{covv_layer_forward.1} parent=5 // pred_check
      _
    $region30: #{covv_layer_forward.1} parent=5 // pred_check_branch
      %164 = sbr.rel (%p161) target = $region32
    $region31: #{covv_layer_forward.1} parent=5 // pred_region
      %s165 = ssub.s32 %s9, 1
      %s166 = ssub.s32 1, %s18
      %s167 = smul.u32 %s19, %s166
      %s168 = smul.u32 4, %s167
      %p169 = scmp.lt.s32.totalorder %s168, 3
      %s170 = scalar_select %p169, %s168, 3
      %s171 = smul.addr %s170, 4
      %s172 = scalar_lea.vmem %s0, %s171
      %p173 = pneg %p51
      %p174 = pneg %p48
      %p175 = pneg %p72
      %p176 = pneg %p69
      %p177 = pneg %p93
      %p178 = pneg %p90
      %p179 = pneg %p121
      %p180 = pneg %p118
      %s181 = smul.u32 %s19, %s18
      %s182 = smul.u32 2, %s181
      %p183 = scmp.lt.s32.totalorder %s182, 1
      %s184 = scalar_select %p183, %s182, 1
      %s185 = smul.addr %s184, 2
      %s186 = smul.addr %s185, 8
      %s187 = scalar_lea.vmem %s3, %s186
      %s188 = ssub.s32 1, %s18
      %s189 = smul.u32 %s19, %s188
      %s190 = smul.u32 4, %s189
      %p191 = scmp.lt.s32.totalorder %s190, 3
      %s192 = scalar_select %p191, %s190, 3
      %s193 = smul.addr %s192, 4
      %s194 = scalar_lea.vmem %s0, %s193
      %s195 = ssub.s32 1, %s18
      %s196 = smul.u32 %s19, %s195
      %s197 = smul.u32 4, %s196
      %s198 = smul.u32 %s19, %s18
      %s199 = smul.u32 2, %s198
      %p200 = scmp.lt.s32.totalorder %s199, 1
      %s201 = scalar_select %p200, %s199, 1
      %s202 = smul.addr %s201, 2
      %s203 = smul.addr %s202, 8
      %s204 = scalar_lea.vmem %s3, %s203
      %s205 = smul.u32 %s19, %s18
      %s206 = smul.u32 2, %s205
      %p208 = scmp.eq.s32.totalorder %s18, 0
      // Predicated region
      $region33: #{covv_layer_forward.1} parent=31 // pred_check
        %p209 = pneg %p208
      $region34: #{covv_layer_forward.1} parent=31 // pred_check_branch
        %211 = sbr.rel (%p209) target = $region36
      $region35: #{covv_layer_forward.1} parent=31 // pred_region
        %v212 = vld [vmem:[%s1] sm:$0xf]
        %v213 = vld [vmem:[%s194] sm:$0xff]
        %v214 = vld [vmem:[%s194 + $0x8] sm:$0xff]
        %v215 = vld [vmem:[%s194 + $0x10] sm:$0xff]
        %v216 = vld [vmem:[%s194 + $0x18] sm:$0xff]
        %v217 = vld [vmem:[%s194 + $0x20] sm:$0xff]
        %v218 = vld [vmem:[%s194 + $0x28] sm:$0xff]
        %v219 = vld [vmem:[%s194 + $0x30] sm:$0xff]
        %v220 = vld [vmem:[%s194 + $0x38] sm:$0xff]
        %v221 = vld [vmem:[%s194 + $0x40] sm:$0x33]
        %v222 = vld [vmem:[%s194 + $0x48] sm:$0x33]
        %v223 = vld [vmem:[%s2] sm:$0xff]
        %225 = vset.pattern.permute.xlu0 0
        %226 = vperm.xlu0 %225, %v223
        %v227 = vpop.permute.xlu0 %226
        %v239 = vunpack.c.l.b16 %v213
        %v240 = vunpack.c.h.b16 %v213
        %v241 = vunpack.c.l.b16 %v214
        %v242 = vunpack.c.h.b16 %v214
        %v243 = vunpack.c.l.b16 %v215
        %v244 = vunpack.c.h.b16 %v215
        %v245 = vunpack.c.l.b16 %v216
        %v246 = vunpack.c.h.b16 %v216
        %v247 = vunpack.c.l.b16 %v217
        %v248 = vunpack.c.h.b16 %v217
        %v249 = vunpack.c.l.b16 %v218
        %v250 = vunpack.c.h.b16 %v218
        %v251 = vunpack.c.l.b16 %v219
        %v252 = vunpack.c.h.b16 %v219
        %v253 = vunpack.c.l.b16 %v220
        %v254 = vunpack.c.h.b16 %v220
        %v255 = vunpack.c.l.b16 %v221
        %v256 = vunpack.c.h.b16 %v221
        %v257 = vunpack.c.l.b16 %v222
        %v258 = vunpack.c.h.b16 %v222
        %v259 = vpack.c.b16 %v243, %v239
        %v260 = vpack.c.b16 %v244, %v240
        %v261 = vpack.c.b16 %v245, %v241
        %v262 = vpack.c.b16 %v246, %v242
        %v263 = vpack.c.b16 %v251, %v247
        %v264 = vpack.c.b16 %v252, %v248
        %v265 = vpack.c.b16 %v253, %v249
        %v266 = vpack.c.b16 %v254, %v250
        %v267 = vpack.c.b16 %v255, %v255
        %v268 = vpack.c.b16 %v256, %v256
        %v269 = vpack.c.b16 %v257, %v257
        %v270 = vpack.c.b16 %v258, %v258
        %vm279 = vcmask 293888
        %v281 = vsel %vm279, %v212, 0
        %vm283 = vcmask 1041408
        %v285 = vsel %vm283, %v267, 0
        %v288 = vsel %vm283, %v268, 0
        %v291 = vsel %vm283, %v269, 0
        %v294 = vsel %vm283, %v270, 0
        %296 = vmatprep.subr.bf16.mxu0 %v260
        %297 = vmatpush1.bf16.msra.mxu0 %v259
        %298 = vmatprep.subr.bf16.mxu0 %v264
        %299 = vmatpush1.bf16.msra.mxu0 %v263
        %300 = vmatprep.subr.bf16.mxu0 %v288
        %301 = vmatpush1.bf16.msra.mxu0 %v285
        %302 = vmatprep.subr.bf16.mxu0 0
        %303 = vmatpush1.bf16.msra.mxu0 0
        %304 = vmatprep.subr.bf16.mxu0 0
        %305 = vmatpush1.bf16.msra.mxu0 0
        %306 = vmatprep.subr.bf16.mxu0 0
        %307 = vmatpush1.bf16.msra.mxu0 0
        %308 = vmatprep.subr.bf16.mxu0 0
        %309 = vmatpush1.bf16.msra.mxu0 0
        %310 = vmatprep.subr.bf16.mxu0 0
        %311 = vmatpush1.bf16.msra.mxu0 0
        %312 = vmatprep.subr.bf16.mxu0 0
        %313 = vmatpush1.bf16.msra.mxu0 0
        %314 = vmatprep.subr.bf16.mxu0 0
        %315 = vmatpush1.bf16.msra.mxu0 0
        %316 = vmatprep.subr.bf16.mxu0 0
        %317 = vmatpush1.bf16.msra.mxu0 0
        %318 = vmatprep.subr.bf16.mxu0 0
        %319 = vmatpush1.bf16.msra.mxu0 0
        %320 = vmatprep.subr.bf16.mxu0 0
        %321 = vmatpush1.bf16.msra.mxu0 0
        %322 = vmatprep.subr.bf16.mxu0 0
        %323 = vmatpush1.bf16.msra.mxu0 0
        %324 = vmatprep.subr.bf16.mxu0 0
        %325 = vmatpush1.bf16.msra.mxu0 0
        %326 = vmatprep.subr.bf16.mxu0 0
        %327 = vmatpush1.bf16.msra.mxu0 0
        %328 = vmatprep.mubr.bf16.mxu0 0
        %329 = vmatmul.mubr.bf16.gmra.mrb[0].mxu0 %v281
        %v330 = vpop.f32.mrb[0].mxu0
        %v331 = vadd.f32 %v227, %v330
        %v332 = vpop.f32.mrb[0].mxu0
        %v333 = vadd.f32 %v227, %v332
        %v334 = vpop.f32.mrb[0].mxu0
        %v335 = vpop.f32.mrb[0].mxu0
        %336 = vdwg.mxu0
        %337 = vmatprep.subr.bf16.mxu0 %v262
        %338 = vmatpush1.bf16.msra.mxu0 %v261
        %339 = vmatprep.subr.bf16.mxu0 %v266
        %340 = vmatpush1.bf16.msra.mxu0 %v265
        %341 = vmatprep.subr.bf16.mxu0 %v294
        %342 = vmatpush1.bf16.msra.mxu0 %v291
        %343 = vmatprep.subr.bf16.mxu0 0
        %344 = vmatpush1.bf16.msra.mxu0 0
        %345 = vmatprep.subr.bf16.mxu0 0
        %346 = vmatpush1.bf16.msra.mxu0 0
        %347 = vmatprep.subr.bf16.mxu0 0
        %348 = vmatpush1.bf16.msra.mxu0 0
        %349 = vmatprep.subr.bf16.mxu0 0
        %350 = vmatpush1.bf16.msra.mxu0 0
        %351 = vmatprep.subr.bf16.mxu0 0
        %352 = vmatpush1.bf16.msra.mxu0 0
        %353 = vmatprep.subr.bf16.mxu0 0
        %354 = vmatpush1.bf16.msra.mxu0 0
        %355 = vmatprep.subr.bf16.mxu0 0
        %356 = vmatpush1.bf16.msra.mxu0 0
        %357 = vmatprep.subr.bf16.mxu0 0
        %358 = vmatpush1.bf16.msra.mxu0 0
        %359 = vmatprep.subr.bf16.mxu0 0
        %360 = vmatpush1.bf16.msra.mxu0 0
        %361 = vmatprep.subr.bf16.mxu0 0
        %362 = vmatpush1.bf16.msra.mxu0 0
        %363 = vmatprep.subr.bf16.mxu0 0
        %364 = vmatpush1.bf16.msra.mxu0 0
        %365 = vmatprep.subr.bf16.mxu0 0
        %366 = vmatpush1.bf16.msra.mxu0 0
        %367 = vmatprep.subr.bf16.mxu0 0
        %368 = vmatpush1.bf16.msra.mxu0 0
        %369 = vmatprep.mubr.bf16.mxu0 0
        %370 = vmatmul.mubr.bf16.gmra.mrb[0].mxu0 %v281
        %v371 = vpop.f32.mrb[0].mxu0
        %v372 = vadd.f32 %v227, %v371
        %v373 = vpop.f32.mrb[0].mxu0
        %v374 = vadd.f32 %v227, %v373
        %v375 = vpop.f32.mrb[0].mxu0
        %v376 = vpop.f32.mrb[0].mxu0
        %377 = vdwg.mxu0
        %p378 = scmp.eq.s32.totalorder %s19, 0
        // Predicated region
        $region37: #{covv_layer_forward.1} parent=35 // pred_check
          %p379 = pneg %p378
        $region38: #{covv_layer_forward.1} parent=35 // pred_check_branch
          %381 = sbr.rel (%p379) target = $region40
        $region39: #{covv_layer_forward.1} parent=35 // pred_region
          %382 = vst [vmem:[#allocation3] sm:$0xff] 0.0
        $region40: #{covv_layer_forward.1} parent=35 // pred_fallthru
          _
        %s383 = smul.u32 %s19, 4
        %s384 = smul.addr %s383, 8
        %s385 = scalar_lea.vmem [#allocation2], %s384
        %386 = vst [vmem:[%s385] sm:$0xff] %v331
        %387 = vst [vmem:[%s385 + $0x8] sm:$0xff] %v333
        %388 = vst [vmem:[%s385 + $0x10] sm:$0xff] %v372
        %389 = vst [vmem:[%s385 + $0x18] sm:$0xff] %v374
        %v390 = vadd.f32 %v331, %v333
        %v391 = vadd.f32 %v390, %v372
        %v392 = vadd.f32 %v391, %v374
        %v393 = vld [vmem:[#allocation3] sm:$0xff]
        %v394 = vadd.f32 %v393, %v392
        %395 = vst [vmem:[#allocation3] sm:$0xff] %v394
      $region36: #{covv_layer_forward.1} parent=31 // pred_fallthru
        _
      %p396 = scmp.eq.s32.totalorder %s18, 1
      // Predicated region
      $region41: #{covv_layer_forward.1} parent=31 // pred_check
        %p397 = pneg %p396
      $region42: #{covv_layer_forward.1} parent=31 // pred_check_branch
        %399 = sbr.rel (%p397) target = $region44
      $region43: #{covv_layer_forward.1} parent=31 // pred_region
        %p400 = scmp.eq.s32.totalorder %s19, 0
        // Predicated region
        $region45: #{covv_layer_forward.1} parent=43 // pred_check
          %p401 = pneg %p400
        $region46: #{covv_layer_forward.1} parent=43 // pred_check_branch
          %403 = sbr.rel (%p401) target = $region48
        $region47: #{covv_layer_forward.1} parent=43 // pred_region
          %v404 = vld [vmem:[#allocation3] sm:$0xff]
          %405 = vadd.xlane.f32.xlu0 %v404
          %v406 = vpop.xlane.xlu0 %405
          %v407 = vrcp.pop 512.0
          %v408 = vmul.f32 %v406, %v407
          %v409 = vld [vmem:[#allocation2] sm:$0xff]
          %v410 = vsub.f32 %v409, %v408
          %v411 = vmul.f32 %v410, %v410
          %v412 = vld [vmem:[#allocation2 + $0x8] sm:$0xff]
          %v413 = vsub.f32 %v412, %v408
          %v414 = vmul.f32 %v413, %v413
          %v415 = vadd.f32 %v411, %v414
          %v416 = vld [vmem:[#allocation2 + $0x10] sm:$0xff]
          %v417 = vsub.f32 %v416, %v408
          %v418 = vmul.f32 %v417, %v417
          %v419 = vadd.f32 %v415, %v418
          %v420 = vld [vmem:[#allocation2 + $0x18] sm:$0xff]
          %v421 = vsub.f32 %v420, %v408
          %v422 = vmul.f32 %v421, %v421
          %v423 = vadd.f32 %v419, %v422
          %424 = vadd.xlane.f32.xlu0 %v423
          %v425 = vpop.xlane.xlu0 %424
          %v426 = vmul.f32 %v425, %v407
          %v427 = vadd.f32 %v426, 1e-05
          %v428 = vrsqrt.pop %v427
          %s429 = scalar_lea.vmem %s2, 8
          %v430 = vld [vmem:[%s429] sm:$0xff]
          %v431 = vmul.f32 %v430, %v428
          %vm432 = vcmask 7168
          %433 = vst.msk [vmem:[#allocation4] sm:$0xff] %vm432, %v431
          %s434 = scalar_lea.vmem %s2, 16
          %v435 = vld [vmem:[%s434] sm:$0xff]
          %v436 = vmul.f32 %v408, %v431
          %v437 = vsub.f32 %v435, %v436
          %438 = vst.msk [vmem:[#allocation5] sm:$0xff] %vm432, %v437
        $region48: #{covv_layer_forward.1} parent=43 // pred_fallthru
          _
        %s439 = smul.u32 %s19, 4
        %s440 = smul.addr %s439, 8
        %s441 = scalar_lea.vmem [#allocation2], %s440
        %v442 = vld [vmem:[%s441] sm:$0xff]
        %v443 = vld [vmem:[%s441 + $0x8] sm:$0xff]
        %v444 = vld [vmem:[%s441 + $0x10] sm:$0xff]
        %v445 = vld [vmem:[%s441 + $0x18] sm:$0xff]
        %v446 = vld [vmem:[#allocation4] sm:$0xff]
        %448 = vset.pattern.permute.xlu0 0
        %449 = vperm.xlu0 %448, %v446
        %v450 = vpop.permute.xlu0 %449
        %v452 = vmul.f32 %v442, %v450
        %v453 = vmul.f32 %v443, %v450
        %v454 = vmul.f32 %v444, %v450
        %v455 = vmul.f32 %v445, %v450
        %v456 = vld [vmem:[#allocation5] sm:$0xff]
        %458 = vset.pattern.permute.xlu0 0
        %459 = vperm.xlu0 %458, %v456
        %v460 = vpop.permute.xlu0 %459
        %v462 = vadd.f32 %v452, %v460
        %v463 = vadd.f32 %v453, %v460
        %v464 = vadd.f32 %v454, %v460
        %v465 = vadd.f32 %v455, %v460
        %466 = vst [vmem:[%s204] sm:$0xff] %v462
        %467 = vst [vmem:[%s204 + $0x8] sm:$0xff] %v463
        %s468 = scalar_lea.vmem %s204, 16
        %469 = vst [vmem:[%s468] sm:$0xff] %v464
        %470 = vst [vmem:[%s468 + $0x8] sm:$0xff] %v465
      $region44: #{covv_layer_forward.1} parent=31 // pred_fallthru
        _
      %s471 = smul.u32 %s19, %s18
      %s472 = smul.u32 2, %s471
      %p473 = scmp.lt.s32.totalorder %s472, 1
      %s474 = scalar_select %p473, %s472, 1
      %s475 = smul.addr %s474, 2
      %s476 = smul.addr %s475, 8
      %s477 = scalar_lea.vmem %s3, %s476
      // Predicated region
      $region49: #{covv_layer_forward.1} parent=31 // pred_check
        %p478 = pneg %p118
      $region50: #{covv_layer_forward.1} parent=31 // pred_check_branch
        %480 = sbr.rel (%p478) target = $region52
      $region51: #{covv_layer_forward.1} parent=31 // pred_region
        %s481 = smul.u32 %s19, %s18
        %s482 = smul.u32 2, %s481
      $region52: #{covv_layer_forward.1} parent=31 // pred_fallthru
        _
    $region32: #{covv_layer_forward.1} parent=5 // pred_fallthru
      _
    %p483 = scmp.le.s32.totalorder 2, %s9
    // Predicated region
    $region53: #{covv_layer_forward.1} parent=5 // pred_check
      %p484 = pneg %p483
    $region54: #{covv_layer_forward.1} parent=5 // pred_check_branch
      %486 = sbr.rel (%p484) target = $region56
    $region55: #{covv_layer_forward.1} parent=5 // pred_region
      %s487 = ssub.s32 %s9, 2
      // Predicated region
      $region57: #{covv_layer_forward.1} parent=55 // pred_check
        %p488 = pneg %p124
      $region58: #{covv_layer_forward.1} parent=55 // pred_check_branch
        %490 = sbr.rel (%p488) target = $region60
      $region59: #{covv_layer_forward.1} parent=55 // pred_region
        %s491 = smul.u32 %s21, %s20
        %s492 = smul.u32 2, %s491
        %p493 = scmp.lt.s32.totalorder %s492, 1
        %s494 = scalar_select %p493, %s492, 1
        %s495 = smul.addr %s494, 2
        %s496 = smul.addr %s495, 8
        %s497 = scalar_lea.vmem %s3, %s496
      $region60: #{covv_layer_forward.1} parent=55 // pred_fallthru
        _
    $region56: #{covv_layer_forward.1} parent=5 // pred_fallthru
      _
  $region6: #{covv_layer_forward.1} parent=0 // loop_footer
    %s13 = sadd.s32 1, %s9
  $region7: #{covv_layer_forward.1} parent=0 // loop_footer_branch
    %8 = sbr.rel target = $region3
  $region8: #{covv_layer_forward.1} parent=0 // loop_exit
    _

</llo_original>
